<compile_context>
chip_gen: v7x
topology: tpu7x:2x2x1
jax: 0.10.0
libtpu: 0.0.40
codegen_flags: <defaults>
</compile_context>

<pallas_src>
import jax
import jax.numpy as jnp
import numpy as np
from jax.experimental import pallas as pl
from jax.experimental.pallas import tpu as pltpu


# ----------------------------------------------------------------------------
# Kernel 1: per-batch avg+max pooling + 3-tap channel conv + sigmoid
# ----------------------------------------------------------------------------
def _pool_att_kernel(x_ref, w_ref, att_ref):
    # x_ref:  (C, HW) VMEM -- one batch, channels on sublanes, H*W lane-dense.
    # w_ref:  (3,)    SMEM -- Conv1d(1, 1, k=3, pad=1, bias=False) weights.
    # att_ref:(1, C)  VMEM -- sigmoid(conv(avg + max)) per channel.
    x = x_ref[...].astype(jnp.float32)
    c_dim = x.shape[0]
    inv_hw = 1.0 / x.shape[1]                                     # static const
    pooled = (jnp.sum(x, axis=-1, keepdims=True) * inv_hw
              + jnp.max(x, axis=-1, keepdims=True))               # (C, 1) avg+max

    # Conv1d(k=3, pad=1, no bias) over channels, applied once to (avg + max):
    #   s[c] = w0*p[c-1] + w1*p[c] + w2*p[c+1]   (zero-padded at both ends)
    # Built as a banded select (VPU) + sublane reduce (XLU). No MXU push and no
    # (C, C) weight matrix materialized outside the kernel.
    jj = jax.lax.broadcasted_iota(jnp.int32, (c_dim, c_dim), 0)   # source chan j
    cc = jax.lax.broadcasted_iota(jnp.int32, (c_dim, c_dim), 1)   # output chan c
    band = (jnp.where(jj == cc - 1, w_ref[0], 0.0)
            + jnp.where(jj == cc,     w_ref[1], 0.0)
            + jnp.where(jj == cc + 1, w_ref[2], 0.0))             # (C, C)
    s = jnp.sum(band * pooled, axis=0, keepdims=True)             # (1, C)
    att_ref[...] = jax.nn.sigmoid(s)


# ----------------------------------------------------------------------------
# Kernel 2: per-batch gather of the K selected channel rows (manual DMA) + scale
# ----------------------------------------------------------------------------
def _gather_scale_kernel(idx_ref, x_hbm, val_ref, o_ref, buf, sem):
    # idx_ref: (B, K) int32 SMEM (scalar prefetch) -- sorted selected channels.
    # x_hbm:   (B, C, HW) ref left in HBM (memory_space=pl.ANY).
    # val_ref: (B, K) f32 SMEM -- attention values of the selected channels.
    # o_ref:   (K, HW) VMEM output tile for this batch (lane-dense).
    # buf:     (K, 1, HW) VMEM scratch; sem: (K,) DMA semaphores.
    b = pl.program_id(0)
    k_sel = o_ref.shape[0]
    # Issue all K row gathers up front (deep-buffered DMAs hide issue latency).
    for k in range(k_sel):
        pltpu.make_async_copy(x_hbm.at[b, pl.ds(idx_ref[b, k], 1), :],
                              buf.at[k], sem.at[k]).start()
    for k in range(k_sel):
        pltpu.make_async_copy(x_hbm.at[b, pl.ds(0, 1), :],
                              buf.at[k], sem.at[k]).wait()
        o_ref[k, :] = (buf[k, 0] * val_ref[b, k]).astype(o_ref.dtype)


def attention_forward(x, conv_w, K):
    B, C, H, W = x.shape
    HW = H * W
    x2 = x.reshape(B, C, HW)          # lane-dense view (last dim multiple of 128)

    att = pl.pallas_call(
        _pool_att_kernel,
        out_shape=jax.ShapeDtypeStruct((B, 1, C), jnp.float32),
        grid=(B,),
        in_specs=[pl.BlockSpec((None, C, HW), lambda b: (b, 0, 0)),
                  pl.BlockSpec(memory_space=pltpu.MemorySpace.SMEM)],
        out_specs=pl.BlockSpec((None, 1, C), lambda b: (b, 0, 0)),
        compiler_params=pltpu.CompilerParams(dimension_semantics=("parallel",)),
    )(x2, conv_w)[:, 0, :]                                        # (B, C)

    # TODO(synk): top-k / argsort are tiny data-dependent sorts; kept in plain JAX.
    vals, idxs = jax.lax.top_k(att, K)            # torch.topk(dim=1)
    order = jnp.argsort(idxs, axis=1)             # torch.argsort of the indices
    s_idx = jnp.take_along_axis(idxs, order, axis=1).astype(jnp.int32)
    s_val = jnp.take_along_axis(vals, order, axis=1)

    out = pl.pallas_call(
        _gather_scale_kernel,
        out_shape=jax.ShapeDtypeStruct((B, K, HW), x.dtype),
        grid_spec=pltpu.PrefetchScalarGridSpec(
            num_scalar_prefetch=1,
            grid=(B,),
            in_specs=[pl.BlockSpec(memory_space=pl.ANY),
                      pl.BlockSpec(memory_space=pltpu.MemorySpace.SMEM)],
            out_specs=pl.BlockSpec((None, K, HW), lambda b, idx: (b, 0, 0)),
            scratch_shapes=[pltpu.VMEM((K, 1, HW), x.dtype),
                            pltpu.SemaphoreType.DMA((K,))]),
        compiler_params=pltpu.CompilerParams(dimension_semantics=("parallel",)),
    )(s_idx, x2, s_val)
    return out.reshape(B, K, H, W)


# ----------------------------------------------------------------------------
# Pure-JAX reference (mirrors the PyTorch forward exactly) for validation.
# ----------------------------------------------------------------------------
def reference(x, conv_w, K):
    avg = jnp.mean(x, axis=(2, 3))
    mx = jnp.max(x, axis=(2, 3))

    def conv(v):
        vp = jnp.pad(v, ((0, 0), (1, 1)))
        return conv_w[0] * vp[:, :-2] + conv_w[1] * vp[:, 1:-1] + conv_w[2] * vp[:, 2:]

    att = jax.nn.sigmoid(conv(avg) + conv(mx))
    vals, idxs = jax.lax.top_k(att, K)
    order = jnp.argsort(idxs, axis=1)
    s_idx = jnp.take_along_axis(idxs, order, axis=1)
    s_val = jnp.take_along_axis(vals, order, axis=1)
    gathered = jnp.take_along_axis(x, s_idx[:, :, None, None], axis=1)
    return s_val[:, :, None, None] * gathered


if __name__ == "__main__":
    B, C, H, W, K = 2, 8, 16, 16, 4

    key = jax.random.PRNGKey(0)
    kx, kw = jax.random.split(key)
    x = jax.random.normal(kx, (B, C, H, W), dtype=jnp.float32)
    # Conv1d weight (out=1, in=1, k=3) flattened to (3,), PyTorch-style init scale.
    bound = 1.0 / np.sqrt(3.0)
    conv_w = jax.random.uniform(kw, (3,), minval=-bound, maxval=bound,
                                dtype=jnp.float32)

    out = attention_forward(x, conv_w, K)
    out = jax.block_until_ready(out)

    ref = jax.block_until_ready(reference(x, conv_w, K))
    np.testing.assert_allclose(np.asarray(out), np.asarray(ref),
                               rtol=1e-5, atol=1e-5)
    assert out.shape == (B, K, H, W)

    print("KERNEL_OK")
</pallas_src>

<mosaic_0001>
module attributes {stable_mosaic.version = 11 : i64} {
  func.func @_pool_att_kernel(%arg0: i32, %arg1: memref<1x8x256xf32, #tpu.memory_space<vmem>>, %arg2: memref<3xf32, #tpu.memory_space<smem>>, %arg3: memref<1x1x8xf32, #tpu.memory_space<vmem>>) attributes {dimension_semantics = [#tpu.dimension_semantics<parallel>], iteration_bounds = array<i64: 2>, scalar_prefetch = 0 : i64, scratch_operands = 0 : i64, tpu.core_type = #tpu.core_type<tc>, window_params = [{transform_indices = @transform_0, window_bounds = array<i64: 1, 8, 256>}, {transform_indices = @transform_1, window_bounds = array<i64: 3>}, {transform_indices = @transform_2, window_bounds = array<i64: 1, 1, 8>}]} {
    %c0 = arith.constant 0 : index
    %c0_0 = arith.constant 0 : index
    %c0_1 = arith.constant 0 : index
    %0 = vector.load %arg1[%c0, %c0_0, %c0_1] : memref<1x8x256xf32, #tpu.memory_space<vmem>>, vector<1x8x256xf32>
    %1 = vector.shape_cast %0 : vector<1x8x256xf32> to vector<8x256xf32>
    %cst = arith.constant dense<0.000000e+00> : vector<8xf32>
    %2 = vector.multi_reduction <add>, %1, %cst [1] : vector<8x256xf32> to vector<8xf32>
    %3 = vector.shape_cast %2 : vector<8xf32> to vector<8x1xf32>
    %cst_2 = arith.constant 3.906250e-03 : f32
    %4 = vector.broadcast %cst_2 : f32 to vector<8x1xf32>
    %5 = arith.mulf %3, %4 : vector<8x1xf32>
    %cst_3 = arith.constant dense<0xFF800000> : vector<8xf32>
    %6 = vector.multi_reduction <maximumf>, %1, %cst_3 [1] : vector<8x256xf32> to vector<8xf32>
    %7 = vector.shape_cast %6 : vector<8xf32> to vector<8x1xf32>
    %8 = arith.addf %5, %7 : vector<8x1xf32>
    %9 = tpu.iota {dimensions = array<i32: 0>} : vector<8x8xi32>
    %10 = tpu.iota {dimensions = array<i32: 1>} : vector<8x8xi32>
    %c1_i32 = arith.constant 1 : i32
    %11 = vector.broadcast %c1_i32 : i32 to vector<8x8xi32>
    %12 = arith.subi %10, %11 : vector<8x8xi32>
    %13 = arith.cmpi eq, %9, %12 : vector<8x8xi32>
    %c0_4 = arith.constant 0 : index
    %14 = memref.load %arg2[%c0_4] : memref<3xf32, #tpu.memory_space<smem>>
    %cst_5 = arith.constant 0.000000e+00 : f32
    %15 = vector.broadcast %14 : f32 to vector<8x8xf32>
    %16 = vector.broadcast %cst_5 : f32 to vector<8x8xf32>
    %17 = arith.select %13, %15, %16 : vector<8x8xi1>, vector<8x8xf32>
    %18 = arith.cmpi eq, %9, %10 : vector<8x8xi32>
    %c1 = arith.constant 1 : index
    %19 = memref.load %arg2[%c1] : memref<3xf32, #tpu.memory_space<smem>>
    %cst_6 = arith.constant 0.000000e+00 : f32
    %20 = vector.broadcast %19 : f32 to vector<8x8xf32>
    %21 = vector.broadcast %cst_6 : f32 to vector<8x8xf32>
    %22 = arith.select %18, %20, %21 : vector<8x8xi1>, vector<8x8xf32>
    %23 = arith.addf %17, %22 : vector<8x8xf32>
    %c1_i32_7 = arith.constant 1 : i32
    %24 = vector.broadcast %c1_i32_7 : i32 to vector<8x8xi32>
    %25 = arith.addi %10, %24 : vector<8x8xi32>
    %26 = arith.cmpi eq, %9, %25 : vector<8x8xi32>
    %c2 = arith.constant 2 : index
    %27 = memref.load %arg2[%c2] : memref<3xf32, #tpu.memory_space<smem>>
    %cst_8 = arith.constant 0.000000e+00 : f32
    %28 = vector.broadcast %27 : f32 to vector<8x8xf32>
    %29 = vector.broadcast %cst_8 : f32 to vector<8x8xf32>
    %30 = arith.select %26, %28, %29 : vector<8x8xi1>, vector<8x8xf32>
    %31 = arith.addf %23, %30 : vector<8x8xf32>
    %32 = vector.broadcast %8 : vector<8x1xf32> to vector<8x8xf32>
    %33 = arith.mulf %31, %32 : vector<8x8xf32>
    %cst_9 = arith.constant dense<0.000000e+00> : vector<8xf32>
    %34 = vector.multi_reduction <add>, %33, %cst_9 [0] : vector<8x8xf32> to vector<8xf32>
    %35 = vector.shape_cast %34 : vector<8xf32> to vector<1x8xf32>
    %36 = arith.negf %35 : vector<1x8xf32>
    %37 = math.exp %36 : vector<1x8xf32>
    %cst_10 = arith.constant 1.000000e+00 : f32
    %38 = vector.broadcast %cst_10 : f32 to vector<1x8xf32>
    %39 = arith.addf %38, %37 : vector<1x8xf32>
    %40 = arith.divf %38, %39 : vector<1x8xf32>
    %c0_11 = arith.constant 0 : index
    %c0_12 = arith.constant 0 : index
    %c0_13 = arith.constant 0 : index
    %41 = vector.load %arg3[%c0_11, %c0_12, %c0_13] : memref<1x1x8xf32, #tpu.memory_space<vmem>>, vector<1x1x8xf32>
    %42 = vector.shape_cast %41 : vector<1x1x8xf32> to vector<1x8xf32>
    %43 = vector.shape_cast %40 : vector<1x8xf32> to vector<1x1x8xf32>
    tpu.vector_store %arg3[%c0_11, %c0_12, %c0_13], %43 {strides = array<i32>} : memref<1x1x8xf32, #tpu.memory_space<vmem>>, vector<1x1x8xf32>,
    return
  }
  func.func @transform_0(%arg0: i32) -> (i32, i32, i32) {
    %c0_i32 = arith.constant 0 : i32
    %c0_i32_0 = arith.constant 0 : i32
    %c0_i32_1 = arith.constant 0 : i32
    return %arg0, %c0_i32, %c0_i32_0 : i32, i32, i32
  }
  func.func @transform_1(%arg0: i32) -> i32 {
    %c0_i32 = arith.constant 0 : i32
    %c0_i32_0 = arith.constant 0 : i32
    return %c0_i32 : i32
  }
  func.func @transform_2(%arg0: i32) -> (i32, i32, i32) {
    %c0_i32 = arith.constant 0 : i32
    %c0_i32_0 = arith.constant 0 : i32
    %c0_i32_1 = arith.constant 0 : i32
    return %arg0, %c0_i32, %c0_i32_0 : i32, i32, i32
  }
}

</mosaic_0001>

<llo_original>
// kernel: tpu_custom_call.1
$region0: #{tpu_custom_call.1}
  #allocation0 [shape = 'u32[]', space=smem, size = 0x4, offset = 0x4, fixed_abs, tag = 'smem constant byte address 0x4 - core index']
  #allocation1 [shape = 'u32[144,128]{1,0:T(1,128)}', space=vmem, size = 0x12000, scoped, tag = 'internal scratch']
  %s0 = inlined_call_operand.hbm [shape: f32[2,8,256], index: 0, kind: input, shape index: {}]
  %s1 = inlined_call_operand.vmem [shape: f32[3], index: 1, kind: input, shape index: {}]
  %s2 = inlined_call_operand.hbm [shape: f32[2,1,8], index: 2, kind: output, shape index: {}]
  %s3 = sld [smem:[#allocation0]]
  $region49: #{tpu_custom_call.1} parent=0
    _
  %s5 = ssub.s32 1, %s3
  %s6 = scalar_select 0, %s5, %s3
  $region1: #{tpu_custom_call.1} parent=0
    #allocation2 [shape = 'u8[16384]{0}', space=vmem, size = 0x4000, scoped, tag = 'input window, operand 0']
    #allocation3 [shape = 's32[2]{0}', space=sflag, size = 0x8, scoped, tag = 'scoped memory for tpu_custom_call.1']
    #allocation4 [shape = 's32[2]{0}', space=sflag, size = 0x8, scoped, tag = 'scoped memory for tpu_custom_call.1']
    #allocation5 [shape = 's32[2]{0}', space=sflag, size = 0x8, scoped, tag = 'scoped memory for tpu_custom_call.1']
    #allocation6 [shape = 'u8[512]{0}', space=smem, size = 0x200, scoped, tag = 'input window, operand 1, single buffered']
    #allocation7 [shape = 'u8[1024]{0}', space=vmem, size = 0x400, scoped, tag = 'output window, operand 0']
    %7 = vsyncpa [#allocation3], 0
    %s8 = scalar_lea.sflag [#allocation3], 1
    %9 = vsyncpa %s8, 0
    %10 = vsyncpa [#allocation5], 0
    %11 = vsyncpa [#allocation4], 0
    %s12 = scalar_lea.sflag [#allocation4], 1
    %13 = vsyncpa %s12, 0
    loop: start=0, step=1, limit=4
    $region2: #{tpu_custom_call.1} parent=1 // loop_pre_header
      _
    $region3: #{tpu_custom_call.1} parent=1 // loop_header
      %s15 = sphi 0, %s19
      %p16 = scmp.ge.s32.totalorder %s15, 4
      %s25 = sphi 0, %s27
      %s28 = sphi 0, %s25
      %s29 = sphi 0, %s28
      %s45 = sphi 0, %s29
      %s49 = sphi 0, %s49
      %s51 = sphi 0, %s49
      %s52 = sphi 0, %s51
      %s66 = sphi 0, %s52
      %s72 = sphi 0, %s74
      %s75 = sphi 0, %s72
      %s76 = sphi 0, %s75
      %s92 = sphi 0, %s76
    $region4: #{tpu_custom_call.1} parent=1 // loop_header_branch
      %18 = sbr.rel (%p16) target = $region8
    $region5: #{tpu_custom_call.1} parent=1 // loop_body
      %s20 = ssub.s32 %s15, 1
      %s21 = ssub.s32 %s15, 2
      %s22 = sadd.s32 %s15, 1
      %s23 = ssub.s32 %s15, %s22
      %p24 = scmp.eq.s32.totalorder %s23, 0
      %s26 = sadd.s32 %s25, 1
      %s27 = scalar_select %p24, %s25, %s26
      %p30 = pneg %p24
      %p31 = scmp.eq.s32.totalorder %s15, 1
      %p32 = por %p30, %p31
      %p33 = scmp.ne.s32.totalorder %s25, %s28
      %p34 = scmp.eq.s32.totalorder %s15, 0
      %p35 = por %p33, %p34
      %p36 = scmp.ne.s32.totalorder %s25, %s28
      %p37 = scmp.eq.s32.totalorder %s20, 1
      %p38 = por %p36, %p37
      %p39 = scmp.ne.s32.totalorder %s28, %s29
      %p40 = scmp.eq.s32.totalorder %s20, 0
      %p41 = por %p39, %p40
      %p42 = scmp.ne.s32.totalorder %s28, %s29
      %p43 = scmp.eq.s32.totalorder %s21, 1
      %p44 = por %p42, %p43
      %p46 = scmp.ne.s32.totalorder %s29, %s45
      %p47 = scmp.eq.s32.totalorder %s21, 0
      %p48 = por %p46, %p47
      %s50 = sadd.s32 %s49, 1
      %p53 = scmp.eq.s32.totalorder %s15, 1
      %p54 = scmp.ne.s32.totalorder %s49, %s51
      %p55 = scmp.eq.s32.totalorder %s15, 0
      %p56 = por %p54, %p55
      %p57 = scmp.ne.s32.totalorder %s49, %s51
      %p58 = scmp.eq.s32.totalorder %s20, 1
      %p59 = por %p57, %p58
      %p60 = scmp.ne.s32.totalorder %s51, %s52
      %p61 = scmp.eq.s32.totalorder %s20, 0
      %p62 = por %p60, %p61
      %p63 = scmp.ne.s32.totalorder %s51, %s52
      %p64 = scmp.eq.s32.totalorder %s21, 1
      %p65 = por %p63, %p64
      %p67 = scmp.ne.s32.totalorder %s52, %s66
      %p68 = scmp.eq.s32.totalorder %s21, 0
      %p69 = por %p67, %p68
      %s70 = ssub.s32 %s15, %s22
      %p71 = scmp.eq.s32.totalorder %s70, 0
      %s73 = sadd.s32 %s72, 1
      %s74 = scalar_select %p71, %s72, %s73
      %p77 = pneg %p71
      %p78 = scmp.eq.s32.totalorder %s15, 1
      %p79 = por %p77, %p78
      %p80 = scmp.ne.s32.totalorder %s72, %s75
      %p81 = scmp.eq.s32.totalorder %s15, 0
      %p82 = por %p80, %p81
      %p83 = scmp.ne.s32.totalorder %s72, %s75
      %p84 = scmp.eq.s32.totalorder %s20, 1
      %p85 = por %p83, %p84
      %p86 = scmp.ne.s32.totalorder %s75, %s76
      %p87 = scmp.eq.s32.totalorder %s20, 0
      %p88 = por %p86, %p87
      %p89 = scmp.ne.s32.totalorder %s75, %s76
      %p90 = scmp.eq.s32.totalorder %s21, 1
      %p91 = por %p89, %p90
      %p93 = scmp.ne.s32.totalorder %s76, %s92
      %p94 = scmp.eq.s32.totalorder %s21, 0
      %p95 = por %p93, %p94
      %p96 = scmp.le.s32.totalorder 1, %s15
      %p97 = scmp.lt.s32.totalorder %s15, 3
      %p98 = pnand %p96, %p97
      %p99 = pneg %p98
      // Predicated region
      $region9: #{tpu_custom_call.1} parent=5 // pred_check
        _
      $region10: #{tpu_custom_call.1} parent=5 // pred_check_branch
        %101 = sbr.rel (%p98) target = $region12
      $region11: #{tpu_custom_call.1} parent=5 // pred_region
        %s102 = ssub.s32 %s15, 1
        // Predicated region
        $region13: #{tpu_custom_call.1} parent=11 // pred_check
          %p103 = pneg %p62
        $region14: #{tpu_custom_call.1} parent=11 // pred_check_branch
          %105 = sbr.rel (%p103) target = $region16
        $region15: #{tpu_custom_call.1} parent=11 // pred_region
          %s107 = ssub.s32 16, 16
          %108 = vsyncadd [#allocation5], %s107
          %s110 = sshll.u32 %s1, 4
          %s111 = int_to_ptr.vmem [resolvable:$true] %s110
          %113 = dma.vmem_to_smem %s111, 16, [#allocation6], [#allocation5]
        $region16: #{tpu_custom_call.1} parent=11 // pred_fallthru
          _
      $region12: #{tpu_custom_call.1} parent=5 // pred_fallthru
        _
      %p114 = scmp.lt.s32.totalorder %s15, 2
      // Predicated region
      $region17: #{tpu_custom_call.1} parent=5 // pred_check
        %p115 = pneg %p114
      $region18: #{tpu_custom_call.1} parent=5 // pred_check_branch
        %117 = sbr.rel (%p115) target = $region20
      $region19: #{tpu_custom_call.1} parent=5 // pred_region
        // Predicated region
        $region21: #{tpu_custom_call.1} parent=19 // pred_check
          %p118 = pneg %p35
        $region22: #{tpu_custom_call.1} parent=19 // pred_check_branch
          %120 = sbr.rel (%p118) target = $region24
        $region23: #{tpu_custom_call.1} parent=19 // pred_region
          %s121 = sand.u32 %s25, 1
          %s122 = scalar_lea.sflag [#allocation3], %s121
          %s123 = sand.u32 %s25, 1
          %s124 = smul.addr %s123, 16
          %s125 = scalar_lea.vmem [#allocation2], %s124
          %s127 = ssub.s32 256, 256
          %128 = vsyncadd %s122, %s127
          %s129 = smul.addr %s15, 2
          %s130 = smul.addr %s129, 128
          %s131 = scalar_lea.hbm %s0, %s130
          %s133 = sshll.u32 %s125, 4
          %s134 = int_to_ptr.vmem [resolvable:$true] %s133
          %136 = dma.hbm_to_vmem [thread:$0]  %s131, 256, %s134, %s122
        $region24: #{tpu_custom_call.1} parent=19 // pred_fallthru
          _
      $region20: #{tpu_custom_call.1} parent=5 // pred_fallthru
        _
      %p137 = scmp.le.s32.totalorder 1, %s15
      %p138 = scmp.lt.s32.totalorder %s15, 3
      %p139 = pnand %p137, %p138
      %p140 = pneg %p139
      // Predicated region
      $region25: #{tpu_custom_call.1} parent=5 // pred_check
        _
      $region26: #{tpu_custom_call.1} parent=5 // pred_check_branch
        %142 = sbr.rel (%p139) target = $region28
      $region27: #{tpu_custom_call.1} parent=5 // pred_region
        %s143 = ssub.s32 %s15, 1
        %s144 = sand.u32 %s28, 1
        %s145 = scalar_lea.sflag [#allocation3], %s144
        %s146 = sand.u32 %s28, 1
        %s147 = smul.addr %s146, 16
        %s148 = scalar_lea.vmem [#allocation2], %s147
        // Predicated region
        $region29: #{tpu_custom_call.1} parent=27 // pred_check
          %p149 = pneg %p41
        $region30: #{tpu_custom_call.1} parent=27 // pred_check_branch
          %151 = sbr.rel (%p149) target = $region32
        $region31: #{tpu_custom_call.1} parent=27 // pred_region
          %152 = dma.done %s145, 256
        $region32: #{tpu_custom_call.1} parent=27 // pred_fallthru
          _
        // Predicated region
        $region33: #{tpu_custom_call.1} parent=27 // pred_check
          %p153 = pneg %p62
        $region34: #{tpu_custom_call.1} parent=27 // pred_check_branch
          %155 = sbr.rel (%p153) target = $region36
        $region35: #{tpu_custom_call.1} parent=27 // pred_region
          %156 = dma.done [#allocation5], 16
        $region36: #{tpu_custom_call.1} parent=27 // pred_fallthru
          _
        %157 = sfence
        %s158 = sand.u32 %s28, 1
        %s159 = scalar_lea.sflag [#allocation3], %s158
        %s160 = sand.u32 %s28, 1
        %s161 = smul.addr %s160, 16
        %s162 = scalar_lea.vmem [#allocation2], %s161
        %p163 = pneg %p41
        %p164 = pneg %p38
        %p165 = pneg %p62
        %p166 = pneg %p59
        %p167 = pneg %p88
        %p168 = pneg %p85
        %s169 = sand.u32 %s75, 1
        %s170 = scalar_lea.sflag [#allocation4], %s169
        %s171 = sand.u32 %s75, 1
        %s172 = scalar_lea.vmem [#allocation7], %s171
        %v173 = vld [vmem:[%s148] sm:$0xff]
        %v174 = vld [vmem:[%s148 + $0x8] sm:$0xff]
        %v175 = vadd.f32 %v173, %v174
        %176 = vadd.xlane.f32.xlu0 %v175
        %v177 = vpop.xlane.xlu0 %176
        %v178 = vmul.f32 %v177, 0.00390625
        %v179 = vmax.f32 %v173, %v174
        %180 = vmax.xlane.f32.xlu0 %v179
        %v181 = vpop.xlane.xlu0 %180
        %v182 = vadd.f32 %v178, %v181
        %v183 = vlaneseq
        %v184 = vshrl.u32 %v183, 7
        %v185 = vlaneseq
        %v186 = vand.u32 %v185, 127
        %v187 = vsub.s32 %v186, 1
        %vm188 = vcmp.eq.s32.totalorder %v184, %v187
        %s189 = sld [smem:[#allocation6]]
        %v190 = vstv %s189
        %v191 = vsel %vm188, %v190, 0.0
        %vm192 = vcmp.eq.s32.totalorder %v184, %v186
        %s193 = sld [smem:[#allocation6 + $0x1]]
        %v194 = vstv %s193
        %v195 = vsel %vm192, %v194, 0.0
        %v196 = vadd.f32 %v191, %v195
        %v197 = vadd.s32 %v186, 1
        %vm198 = vcmp.eq.s32.totalorder %v184, %v197
        %s199 = sld [smem:[#allocation6 + $0x2]]
        %v200 = vstv %s199
        %v201 = vsel %vm198, %v200, 0.0
        %v202 = vadd.f32 %v196, %v201
        %v203 = vmul.f32 %v202, %v182
        %vm204 = vcmask 64512
        %v205 = vsel %vm204, %v203, 0.0
        %v206 = vrot.slane %v205, 4
        %v207 = vadd.f32 %v205, %v206
        %v208 = vrot.slane %v207, 2
        %v209 = vadd.f32 %v207, %v208
        %v210 = vrot.slane %v209, 1
        %v211 = vadd.f32 %v209, %v210
        %v212 = vxor.u32 %v211, 2147483648
        %v213 = vmul.f32 %v212, 1.442695
        %v214 = vpow.pop %v213
        %v215 = vadd.f32 %v214, 1.0
        %v216 = vrcp.pop %v215
        %v217 = vmul.f32 1.0, %v216
        %vm218 = vcmask 57344
        %219 = vst.msk [vmem:[%s172] sm:$0x1] %vm218, %v217
        %s220 = sand.u32 %s75, 1
        %s221 = scalar_lea.sflag [#allocation4], %s220
        %s222 = sand.u32 %s75, 1
        %s223 = scalar_lea.vmem [#allocation7], %s222
        // Predicated region
        $region37: #{tpu_custom_call.1} parent=27 // pred_check
          %p224 = pneg %p85
        $region38: #{tpu_custom_call.1} parent=27 // pred_check_branch
          %226 = sbr.rel (%p224) target = $region40
        $region39: #{tpu_custom_call.1} parent=27 // pred_region
          %s228 = ssub.s32 16, 16
          %229 = vsyncadd %s221, %s228
          %s230 = smul.addr %s20, 16
          %s231 = scalar_lea.hbm %s2, %s230
          %s233 = sshll.u32 %s223, 4
          %s234 = int_to_ptr.vmem [resolvable:$true] %s233
          %236 = dma.vmem_to_hbm [thread:$0]  %s234, 16, %s231, %s221
        $region40: #{tpu_custom_call.1} parent=27 // pred_fallthru
          _
      $region28: #{tpu_custom_call.1} parent=5 // pred_fallthru
        _
      %p237 = scmp.le.s32.totalorder 2, %s15
      // Predicated region
      $region41: #{tpu_custom_call.1} parent=5 // pred_check
        %p238 = pneg %p237
      $region42: #{tpu_custom_call.1} parent=5 // pred_check_branch
        %240 = sbr.rel (%p238) target = $region44
      $region43: #{tpu_custom_call.1} parent=5 // pred_region
        %s241 = ssub.s32 %s15, 2
        // Predicated region
        $region45: #{tpu_custom_call.1} parent=43 // pred_check
          %p242 = pneg %p91
        $region46: #{tpu_custom_call.1} parent=43 // pred_check_branch
          %244 = sbr.rel (%p242) target = $region48
        $region47: #{tpu_custom_call.1} parent=43 // pred_region
          %s245 = sand.u32 %s76, 1
          %s246 = scalar_lea.sflag [#allocation4], %s245
          %s247 = sand.u32 %s76, 1
          %s248 = scalar_lea.vmem [#allocation7], %s247
          %249 = dma.done %s246, 16
        $region48: #{tpu_custom_call.1} parent=43 // pred_fallthru
          _
      $region44: #{tpu_custom_call.1} parent=5 // pred_fallthru
        _
    $region6: #{tpu_custom_call.1} parent=1 // loop_footer
      %s19 = sadd.s32 1, %s15
    $region7: #{tpu_custom_call.1} parent=1 // loop_footer_branch
      %14 = sbr.rel target = $region3
    $region8: #{tpu_custom_call.1} parent=1 // loop_exit
      _
    %250 = vsyncpa [#allocation3], 1
    %s251 = scalar_lea.sflag [#allocation3], 1
    %252 = vsyncpa %s251, 1
    %253 = vsyncpa [#allocation4], 1
    %s254 = scalar_lea.sflag [#allocation4], 1
    %255 = vsyncpa %s254, 1
    %256 = vsyncpa [#allocation5], 1
    %s257 = scalar_lea.sflag [#allocation5], 1
    %258 = vsyncpa %s257, 1

</llo_original>
